<compile_context>
chip_gen: v7x
topology: tpu7x:2x2x1
jax: 0.10.0
libtpu: 0.0.40
codegen_flags: <defaults>
</compile_context>

<pallas_src>
import functools

import jax
import jax.numpy as jnp
from jax import lax
from jax.experimental import pallas as pl
from jax.experimental.pallas import tpu as pltpu

_EPS = 1e-5          # nn.InstanceNorm2d default eps
_NEG_SLOPE = 0.2     # LeakyReLU negative_slope


def _vmem_limit_bytes():
    """~75% of this generation's physical VMEM (capped), not a flat 32 MiB."""
    default = 32 * 1024 * 1024
    try:
        cap = getattr(pltpu.get_tpu_info(), "vmem_capacity_bytes", None)
    except Exception:
        return default
    if not cap:
        return default
    return int(min(max(cap * 3 // 4, default), 100 * 1024 * 1024))


@functools.lru_cache(maxsize=None)
def _roll_sign():
    """+1 if pltpu.roll matches jnp.roll (out[i] = in[i - shift]), else -1.

    One tiny, cached pallas_call; guards the tap-shift sign against any
    rotate-direction ambiguity across compiler versions.
    """
    def k(x_ref, o_ref):
        o_ref[...] = pltpu.roll(x_ref[...], 1, axis=1)

    with jax.ensure_compile_time_eval():
        x = lax.broadcasted_iota(jnp.int32, (8, 128), 1)
        y = pl.pallas_call(
            k, out_shape=jax.ShapeDtypeStruct((8, 128), jnp.int32))(x)
        return -1 if int(y[0, 1]) == 2 else 1


def _pick_batch_tile(N, Cin, Cout, HW, vmem_limit):
    """Largest divisor of N (<= 8) whose in-kernel footprint fits VMEM."""
    # Crude per-image estimate: double-buffered f32 in/out blocks, f32 patch
    # scratch (9*Cin rows), and live f32 intermediates.
    per_image = HW * 4 * (2 * Cin + 2 * Cout + 9 * Cin + 3 * Cout + 2 * Cin)
    budget = max(vmem_limit // 2, 1)
    best = 1
    for cand in range(1, min(N, 8) + 1):
        if N % cand == 0 and cand * per_image <= budget:
            best = cand
    return best


def _pick_spatial_tile(HW, cap=2048):
    """Largest multiple-of-128 divisor of HW up to `cap` (else full HW)."""
    if HW % 128 != 0:
        return HW
    best = 128
    t = 256
    while t <= min(HW, cap):
        if HW % t == 0:
            best = t
        t += 128
    return best


def _conv3x3_in_lrelu_kernel(x_ref, w_ref, o_ref, patch_ref, *,
                             H, W, B, roll_sign):
    """One batch tile (B images) per grid step.

    x_ref:     (B, Cin, H*W)    float32 input tile
    w_ref:     (Cout, 9*Cin)    bfloat16 weights, row = (ky*3 + kx)*Cin + ci
    o_ref:     (B, Cout, H*W)   float32 output tile
    patch_ref: (9*Cin, B*H*W)   float32 VMEM scratch (im2col patches)
    """
    Cin = x_ref.shape[1]
    HW = H * W
    L = B * HW

    # Channels -> sublanes, (batch, spatial) -> lanes.  128-aligned lane
    # stitch in VMEM; the HBM layout stays untouched.
    if B == 1:
        x = x_ref[0]                                           # (Cin, HW)
    else:
        x = jnp.concatenate([x_ref[b] for b in range(B)], axis=1)  # (Cin, L)

    # Hoisted boundary masks, shared by all 9 taps.  Positions whose rolled
    # source falls outside the image (including across the batch seam of the
    # flattened B*HW axis) are exactly the row/col-invalid ones.
    q = lax.broadcasted_iota(jnp.int32, (1, L), 1)
    col = q % W
    row = (q // W) % H
    row_ok = (row >= 1, None, row < H - 1)     # dy = -1, 0, +1
    col_ok = (col >= 1, None, col < W - 1)     # dx = -1, 0, +1

    # Build the 9 taps with lane rotations (XLU slot, off the vld/vst path)
    # + edge masks, writing each straight into the patch scratch.
    for ky in range(3):
        dy = ky - 1
        for kx in range(3):
            dx = kx - 1
            s = dy * W + dx                     # want tap[q] = x[q + s]
            if s == 0:
                t = x
            else:
                shift = (-s if roll_sign > 0 else s) % L
                t = pltpu.roll(x, shift, axis=1)
            m = row_ok[dy + 1]
            c = col_ok[dx + 1]
            if m is None:
                m = c
            elif c is not None:
                m = jnp.logical_and(m, c)
            if m is not None:
                t = jnp.where(m, t, 0.0)
            base = (ky * 3 + kx) * Cin
            patch_ref[pl.ds(base, Cin), :] = t

    # Single MXU matmul, bf16 operands, f32 accumulation.  The conv bias is
    # intentionally omitted: InstanceNorm (affine=False) mean subtraction
    # cancels a per-channel bias exactly.
    acc = jnp.dot(w_ref[...], patch_ref[...].astype(jnp.bfloat16),
                  preferred_element_type=jnp.float32)          # (Cout, L)

    # InstanceNorm2d (affine=False, biased variance) per image — lane-axis
    # reductions on fully packed vregs (128-aligned static lane slices).
    for b in range(B):
        a = acc[:, b * HW:(b + 1) * HW]                        # (Cout, HW)
        mean = jnp.mean(a, axis=1, keepdims=True)
        xc = a - mean
        var = jnp.mean(xc * xc, axis=1, keepdims=True)
        xn = xc * lax.rsqrt(var + _EPS)
        # LeakyReLU(0.2) as a single max.
        o_ref[b] = jnp.maximum(xn, _NEG_SLOPE * xn).astype(o_ref.dtype)


def _conv1x1_kernel(x_ref, w_ref, b_ref, o_ref):
    """last_layer=True path: 1x1 conv (+bias) only — no norm / activation.

    x_ref: (1, Cin, T)   float32 input tile (T lane-dense spatial positions)
    w_ref: (Cout, Cin)   bfloat16 weights
    b_ref: (Cout, 1)     float32 bias
    o_ref: (1, Cout, T)  float32 output tile
    """
    x = x_ref[0].astype(jnp.bfloat16)                          # (Cin, T)
    y = jnp.dot(w_ref[...], x,
                preferred_element_type=jnp.float32) + b_ref[...]
    o_ref[0] = y.astype(o_ref.dtype)


def conv_block_forward(x_nchw, weight, bias, *, last_layer=False):
    """Forward pass of ConvBlock.

    x_nchw: (N, Cin, H, W) float32
    weight: (Cout, Cin, k, k) float32   (k = 1 if last_layer else 3)
    bias:   (Cout,) float32
    Returns (N, Cout, H, W) float32.
    """
    N, Cin, H, W = x_nchw.shape
    Cout = weight.shape[0]
    HW = H * W
    vmem_limit = _vmem_limit_bytes()

    # Free, contiguous layout change (no transpose, no pad -> no extra HBM pass).
    x = x_nchw.reshape(N, Cin, HW).astype(jnp.float32)

    if last_layer:
        assert weight.shape == (Cout, Cin, 1, 1)
        w = weight[:, :, 0, 0].astype(jnp.bfloat16)            # (Cout, Cin)
        b = bias.reshape(Cout, 1).astype(jnp.float32)
        tile = _pick_spatial_tile(HW)
        out = pl.pallas_call(
            _conv1x1_kernel,
            out_shape=jax.ShapeDtypeStruct((N, Cout, HW), jnp.float32),
            grid_spec=pltpu.PrefetchScalarGridSpec(
                num_scalar_prefetch=0,
                grid=(N, HW // tile),
                in_specs=[
                    pl.BlockSpec((1, Cin, tile), lambda n, s: (n, 0, s)),
                    pl.BlockSpec((Cout, Cin), lambda n, s: (0, 0)),
                    pl.BlockSpec((Cout, 1), lambda n, s: (0, 0)),
                ],
                out_specs=pl.BlockSpec((1, Cout, tile), lambda n, s: (n, 0, s)),
            ),
            compiler_params=pltpu.CompilerParams(
                dimension_semantics=("parallel", "parallel"),
                vmem_limit_bytes=vmem_limit),
        )(x, w, b)
    else:
        assert weight.shape == (Cout, Cin, 3, 3)
        # Weight rows ordered (ky*3 + kx)*Cin + ci, matching the patch build.
        w = jnp.transpose(weight, (0, 2, 3, 1)).reshape(Cout, 9 * Cin)
        w = w.astype(jnp.bfloat16)
        # NOTE: `bias` is intentionally NOT passed to the kernel.  On this
        # (non-last) path the module always applies InstanceNorm2d
        # (affine=False), whose mean subtraction cancels a per-channel bias
        # exactly.  Do not reuse this branch for a bare "conv only" block.
        bt = _pick_batch_tile(N, Cin, Cout, HW, vmem_limit)
        kernel = functools.partial(_conv3x3_in_lrelu_kernel,
                                   H=H, W=W, B=bt, roll_sign=_roll_sign())
        # TODO(synk): for large H*W add a row-tile grid axis (1-row halo) with a
        # two-pass InstanceNorm (sum/sumsq VMEM scratch over an 'arbitrary'
        # trailing axis) so blocks fit v7x's 64 MiB VMEM and both TensorCores
        # get work even at N == 1.
        out = pl.pallas_call(
            kernel,
            out_shape=jax.ShapeDtypeStruct((N, Cout, HW), jnp.float32),
            grid_spec=pltpu.PrefetchScalarGridSpec(
                num_scalar_prefetch=0,
                grid=(N // bt,),
                in_specs=[
                    pl.BlockSpec((bt, Cin, HW), lambda n: (n, 0, 0)),
                    pl.BlockSpec((Cout, 9 * Cin), lambda n: (0, 0)),
                ],
                out_specs=pl.BlockSpec((bt, Cout, HW), lambda n: (n, 0, 0)),
                scratch_shapes=[pltpu.VMEM((9 * Cin, bt * HW), jnp.float32)],
            ),
            compiler_params=pltpu.CompilerParams(
                dimension_semantics=("parallel",),
                vmem_limit_bytes=vmem_limit),
        )(x, w)

    return out.reshape(N, Cout, H, W)


def _reference_forward(x_nchw, weight, bias, *, last_layer=False):
    """Pure-JAX reference (XLA conv) mirroring the PyTorch module."""
    pad = 0 if last_layer else 1
    y = lax.conv_general_dilated(
        x_nchw, weight,
        window_strides=(1, 1),
        padding=[(pad, pad), (pad, pad)],
        dimension_numbers=("NCHW", "OIHW", "NCHW"),
    ) + bias.reshape(1, -1, 1, 1)
    if not last_layer:
        mean = jnp.mean(y, axis=(2, 3), keepdims=True)
        var = jnp.mean((y - mean) ** 2, axis=(2, 3), keepdims=True)
        y = (y - mean) * lax.rsqrt(var + _EPS)
        y = jnp.where(y >= 0, y, _NEG_SLOPE * y)
    return y


if __name__ == "__main__":
    key = jax.random.PRNGKey(0)
    k_x, k_w3, k_b3, k_w1, k_b1 = jax.random.split(key, 5)

    N, Cin, H, W = 2, 4, 16, 16
    Cout = 8

    x = jax.random.normal(k_x, (N, Cin, H, W), dtype=jnp.float32)

    # Deterministic synthetic parameters (shapes match nn.Conv2d).
    w3 = 0.1 * jax.random.normal(k_w3, (Cout, Cin, 3, 3), dtype=jnp.float32)
    b3 = 0.1 * jax.random.normal(k_b3, (Cout,), dtype=jnp.float32)
    w1 = 0.1 * jax.random.normal(k_w1, (Cout, Cin, 1, 1), dtype=jnp.float32)
    b1 = 0.1 * jax.random.normal(k_b1, (Cout,), dtype=jnp.float32)

    # Main path: last_layer=False (conv3x3 -> InstanceNorm -> LeakyReLU).
    out_main = jax.block_until_ready(
        conv_block_forward(x, w3, b3, last_layer=False))
    ref_main = _reference_forward(x, w3, b3, last_layer=False)

    # last_layer=True path (1x1 conv only).
    out_last = jax.block_until_ready(
        conv_block_forward(x, w1, b1, last_layer=True))
    ref_last = _reference_forward(x, w1, b1, last_layer=True)

    assert out_main.shape == (N, Cout, H, W)
    assert out_last.shape == (N, Cout, H, W)

    # bf16 matmul operands (f32 accumulation); the normalized main-path output
    # has unit per-channel variance, so these tolerances are a few % of 1 std.
    err_main = float(jnp.max(jnp.abs(out_main - ref_main)))
    err_last = float(jnp.max(jnp.abs(out_last - ref_last)))
    assert err_main < 1e-1, f"main-path max abs err {err_main}"
    assert err_last < 2e-2, f"last-layer max abs err {err_last}"

    print("KERNEL_OK")
</pallas_src>

<mosaic_0001>
module attributes {stable_mosaic.version = 11 : i64} {
  func.func @k(%arg0: memref<8x128xi32, #tpu.memory_space<vmem>>, %arg1: memref<8x128xi32, #tpu.memory_space<vmem>>) attributes {dimension_semantics = [], scalar_prefetch = 0 : i64, scratch_operands = 0 : i64, tpu.core_type = #tpu.core_type<tc>} {
    %c0 = arith.constant 0 : index
    %c0_0 = arith.constant 0 : index
    %0 = vector.load %arg0[%c0, %c0_0] : memref<8x128xi32, #tpu.memory_space<vmem>>, vector<8x128xi32>
    %c1_i32 = arith.constant 1 : i32
    %1 = tpu.dynamic_rotate %0 by %c1_i32 dim 1 : vector<8x128xi32>, i32 -> vector<8x128xi32>
    %c0_1 = arith.constant 0 : index
    %c0_2 = arith.constant 0 : index
    %2 = vector.load %arg1[%c0_1, %c0_2] : memref<8x128xi32, #tpu.memory_space<vmem>>, vector<8x128xi32>
    tpu.vector_store %arg1[%c0_1, %c0_2], %1 {strides = array<i32>} : memref<8x128xi32, #tpu.memory_space<vmem>>, vector<8x128xi32>,
    return
  }
}

</mosaic_0001>

<llo_original>
// kernel: tpu_custom_call.1
$region0: #{tpu_custom_call.1}
  #allocation0 [shape = 'u32[]', space=smem, size = 0x4, offset = 0x4, fixed_abs, tag = 'smem constant byte address 0x4 - core index']
  #allocation1 [shape = 'u32[144,128]{1,0:T(1,128)}', space=vmem, size = 0x12000, scoped, tag = 'internal scratch']
  %s0 = inlined_call_operand.hbm [shape: s32[8,128], index: 0, kind: input, shape index: {}]
  %s1 = inlined_call_operand.hbm [shape: s32[8,128], index: 1, kind: output, shape index: {}]
  %s2 = sld [smem:[#allocation0]]
  $region18: #{tpu_custom_call.1} parent=0
    _
  %s4 = ssub.s32 1, %s2
  %s5 = scalar_select 0, %s4, %s2
  $region1: #{tpu_custom_call.1} parent=0
    #allocation2 [shape = 'u8[4096]{0}', space=vmem, size = 0x1000, scoped, tag = 'input window, operand 0, single buffered']
    #allocation3 [shape = 's32[1]{0}', space=sflag, size = 0x4, scoped, tag = 'scoped memory for tpu_custom_call.1']
    #allocation4 [shape = 's32[1]{0}', space=sflag, size = 0x4, scoped, tag = 'scoped memory for tpu_custom_call.1']
    #allocation5 [shape = 'u8[4096]{0}', space=vmem, size = 0x1000, scoped, tag = 'output window, operand 0, single buffered']
    %6 = vsyncpa [#allocation3], 0
    %7 = vsyncpa [#allocation4], 0
    // Predicated region
    $region2: #{tpu_custom_call.1} parent=1 // pred_check
      _
    $region3: #{tpu_custom_call.1} parent=1 // pred_check_branch
      %9 = sbr.rel (0) target = $region5
    $region4: #{tpu_custom_call.1} parent=1 // pred_region
      %s11 = ssub.s32 128, 128
      %12 = vsyncadd [#allocation3], %s11
      %s14 = sshll.u32 [#allocation2], 4
      %s15 = int_to_ptr.vmem [resolvable:$true] %s14
      %17 = dma.hbm_to_vmem [thread:$0]  %s0, 128, %s15, [#allocation3]
    $region5: #{tpu_custom_call.1} parent=1 // pred_fallthru
      _
    // Predicated region
    $region6: #{tpu_custom_call.1} parent=1 // pred_check
      _
    $region7: #{tpu_custom_call.1} parent=1 // pred_check_branch
      %19 = sbr.rel (0) target = $region9
    $region8: #{tpu_custom_call.1} parent=1 // pred_region
      %20 = dma.done [#allocation3], 128
    $region9: #{tpu_custom_call.1} parent=1 // pred_fallthru
      _
    %v21 = vld [vmem:[#allocation2] sm:$0xff]
    %22 = vrot.lane.b32.xlu0 %v21, 1
    %v23 = vpop.permute.xlu0 %22
    %24 = vst [vmem:[#allocation5] sm:$0xff] %v23
    // Predicated region
    $region10: #{tpu_custom_call.1} parent=1 // pred_check
      _
    $region11: #{tpu_custom_call.1} parent=1 // pred_check_branch
      %26 = sbr.rel (0) target = $region13
    $region12: #{tpu_custom_call.1} parent=1 // pred_region
      %s28 = ssub.s32 128, 128
      %29 = vsyncadd [#allocation4], %s28
      %s31 = sshll.u32 [#allocation5], 4
      %s32 = int_to_ptr.vmem [resolvable:$true] %s31
      %34 = dma.vmem_to_hbm [thread:$0]  %s32, 128, %s1, [#allocation4]
    $region13: #{tpu_custom_call.1} parent=1 // pred_fallthru
      _
    // Predicated region
    $region14: #{tpu_custom_call.1} parent=1 // pred_check
      _
    $region15: #{tpu_custom_call.1} parent=1 // pred_check_branch
      %36 = sbr.rel (0) target = $region17
    $region16: #{tpu_custom_call.1} parent=1 // pred_region
      %37 = dma.done [#allocation4], 128
    $region17: #{tpu_custom_call.1} parent=1 // pred_fallthru
      _
    %38 = vsyncpa [#allocation3], 1
    %39 = vsyncpa [#allocation4], 1

</llo_original>
